<compile_context>
chip_gen: v7x
topology: tpu7x:2x2x1
jax: 0.10.0
libtpu: 0.0.40
codegen_flags: <defaults>
</compile_context>

<pallas_src>
import jax
import jax.numpy as jnp
from jax.experimental import pallas as pl
from jax.experimental.pallas import tpu as pltpu

EPS = 1e-5  # nn.BatchNorm2d default eps


def _toeplitz_rhs(w_hwio, W, even_w_first=False):
    """(3,3,Ci,Co) conv weight -> per-kh matmul RHS of shape (3, W*Ci, W*Co).

    Rows (K) ordered (w_in, ci); columns ordered (w_out, co).  kw taps and the
    width zero-padding (padding=1) are folded into the banded structure.  With
    even_w_first=True the output columns are ordered [w=0,2,.. | 1,3,..] so a
    2-wide W max-pool is a max of the two contiguous lane halves.
    """
    KH, KW, Ci, Co = w_hwio.shape
    w_in = jnp.arange(W)[:, None]
    w_out = jnp.arange(W)[None, :]
    rhs = jnp.zeros((KH, W, Ci, W, Co), jnp.float32)
    for kw in range(KW):
        mask = (w_in == w_out + (kw - 1)).astype(jnp.float32)        # (W, W)
        rhs = rhs + (mask[None, :, None, :, None] *
                     w_hwio[:, kw, :, :].astype(jnp.float32)[:, None, :, None, :])
    if even_w_first:
        perm = jnp.concatenate([jnp.arange(0, W, 2), jnp.arange(1, W, 2)])
        rhs = rhs[:, :, :, perm, :]
    return rhs.reshape(KH, W * Ci, W * Co)


@jax.jit
def convblock_pallas(x_nchw, params):
    (w1, b1, g1, be1, w2, b2, g2, be2) = params
    del b1, b2  # conv biases are cancelled exactly by the training-mode BN mean

    N, Cin, H, W = x_nchw.shape
    Cout = w1.shape[-1]
    assert H % 2 == 0 and W % 2 == 0, "maxpool(2,2) needs even spatial dims"
    assert (W & (W - 1)) == 0, "lane-roll channel reduction needs W = 2**k"

    Hp = H + 2                   # per-image padded row count
    G = N * Hp                   # flattened padded slab rows
    M = G - 2                    # conv accumulator rows (N*H valid + seam junk)
    Wc1 = W * Cin                # input lane width
    Wc = W * Cout                # conv output lane width (128 here)
    Ho, Wo = H // 2, W // 2
    inv_count = 1.0 / float(N * H * W)

    def kernel(xp_ref, rhs1_ref, g1_ref, be1_ref, rhs2_ref, g2_ref, be2_ref,
               out_ref, y2p_ref, pool_ref):
        # Rows r of the accumulators map to image n = r // Hp, output row
        # h = r % Hp; rows with (r % Hp) >= H are cross-image seam junk and are
        # excluded from the BN statistics.
        r = jax.lax.broadcasted_iota(jnp.int32, (M, 1), 0)
        validf = ((r % Hp) < H).astype(jnp.float32)

        def channel_sums(v):
            # v: (M, Wc), lanes ordered (*, co) with period Cout.  Row-sum then
            # a cyclic lane-roll doubling tree (XLU slot) -> every lane holds
            # the batch sum of its channel (co = lane mod Cout).
            s = jnp.sum(v, axis=0, keepdims=True)          # (1, Wc)
            step = Cout
            while step < Wc:
                s = s + pltpu.roll(s, shift=step, axis=1)
                step *= 2
            return s

        def bn_scale_shift(s, ss, g_ref, be_ref):
            # One-pass training-mode BN folded into per-lane scale/shift,
            # computed from the f32 accumulators.
            mean = s * inv_count
            var = jnp.maximum(ss * inv_count - mean * mean, 0.0)
            scale = g_ref[...] * jax.lax.rsqrt(var + EPS)
            shift = be_ref[...] - mean * scale
            return scale, shift

        def conv3taps(lhs_ref, rhs_ref):
            # 3 MXU matmuls (one per kh tap); LHS windows are contiguous row
            # ranges of the flattened padded slab, cast to bf16; f32 accumulate.
            acc = None
            for kh in range(3):
                lhs = lhs_ref[kh:kh + M, :].astype(jnp.bfloat16)
                part = jnp.dot(lhs, rhs_ref[kh],
                               preferred_element_type=jnp.float32)
                acc = part if acc is None else acc + part
            return acc

        # ---------------- conv1 + BN1 + ReLU1 --------------------------------
        acc1 = conv3taps(xp_ref, rhs1_ref)                 # (M, Wc) f32
        a1m = acc1 * validf
        scale1, shift1 = bn_scale_shift(channel_sums(a1m),
                                        channel_sums(a1m * acc1),
                                        g1_ref, be1_ref)
        y1 = jnp.maximum(acc1 * scale1 + shift1, 0.0)

        # ---------------- conv2 padded input slab ----------------------------
        # y2p row n*Hp + (h+1) = y1 row n*Hp + h; the single offset-1 store
        # does that for every image at once, then the per-image border rows
        # (which also overwrite the seam junk) are zeroed.
        y2p_ref[1:1 + M, :] = y1
        zrow = jnp.zeros((1, Wc), jnp.float32)
        for n in range(N):
            y2p_ref[n * Hp:n * Hp + 1, :] = zrow                   # top border
            y2p_ref[n * Hp + H + 1:n * Hp + H + 2, :] = zrow       # bottom border

        # ---------------- conv2 + BN2 + ReLU2 --------------------------------
        acc2 = conv3taps(y2p_ref, rhs2_ref)                # (M, Wc) f32
        a2m = acc2 * validf
        scale2, shift2 = bn_scale_shift(channel_sums(a2m),
                                        channel_sums(a2m * acc2),
                                        g2_ref, be2_ref)
        y2 = jnp.maximum(acc2 * scale2 + shift2, 0.0)

        # ---------------- H-pool (W-pool done lane-wise in the wrapper) ------
        pool_ref[...] = y2
        for n in range(N):
            base = n * Hp
            ev = pool_ref[pl.ds(base, Ho, stride=2), :]        # rows h = 0,2,..
            od = pool_ref[pl.ds(base + 1, Ho, stride=2), :]    # rows h = 1,3,..
            out_ref[n * Ho:(n + 1) * Ho, :] = jnp.maximum(ev, od)

    # ---- wrapper-side layout plumbing (tiny) --------------------------------
    # NCHW -> H-padded lane-dense 2-D slab (N*(H+2), W*Cin); borders are zero.
    x_nhwc = jnp.transpose(x_nchw, (0, 2, 3, 1)).astype(jnp.float32)
    xp = jnp.pad(x_nhwc, ((0, 0), (1, 1), (0, 0), (0, 0))).reshape(G, Wc1)
    rhs1 = _toeplitz_rhs(w1, W).astype(jnp.bfloat16)                  # (3, W*Cin,  Wc)
    rhs2 = _toeplitz_rhs(w2, W, even_w_first=True).astype(jnp.bfloat16)  # (3, Wc, Wc)
    lane = lambda v: jnp.tile(v.reshape(1, Cout).astype(jnp.float32), (1, W))

    out2d = pl.pallas_call(
        kernel,
        out_shape=jax.ShapeDtypeStruct((N * Ho, Wc), jnp.float32),
        grid=(1,),
        in_specs=[
            pl.BlockSpec((G, Wc1), lambda i: (0, 0)),
            pl.BlockSpec((3, Wc1, Wc), lambda i: (0, 0, 0)),
            pl.BlockSpec((1, Wc), lambda i: (0, 0)),
            pl.BlockSpec((1, Wc), lambda i: (0, 0)),
            pl.BlockSpec((3, Wc, Wc), lambda i: (0, 0, 0)),
            pl.BlockSpec((1, Wc), lambda i: (0, 0)),
            pl.BlockSpec((1, Wc), lambda i: (0, 0)),
        ],
        out_specs=pl.BlockSpec((N * Ho, Wc), lambda i: (0, 0)),
        scratch_shapes=[
            pltpu.VMEM((G, Wc), jnp.float32),   # conv2 padded input slab
            pltpu.VMEM((M, Wc), jnp.float32),   # pool staging slab
        ],
        compiler_params=pltpu.CompilerParams(
            dimension_semantics=("arbitrary",),
            # ~200 KiB of live buffers at these shapes; 4 MiB is honest + slack.
            # Re-derive once production tiling (v7x: 64 MiB physical) is added.
            vmem_limit_bytes=4 * 1024 * 1024,
        ),
    )(xp, rhs1, lane(g1), lane(be1), rhs2, lane(g2), lane(be2))

    # (N*Ho, Wc): rows=(n,ho), lanes=[even w | odd w] x co  -> W-pool -> NCHW.
    half = Wo * Cout
    pooled = jnp.maximum(out2d[:, :half], out2d[:, half:])
    return jnp.transpose(pooled.reshape(N, Ho, Wo, Cout), (0, 3, 1, 2))


def convblock_ref(x_nchw, params):
    # Pure-JAX f32 reference mirroring the PyTorch forward (training-mode BN,
    # conv biases included — they cancel against the BN mean).
    (w1, b1, g1, be1, w2, b2, g2, be2) = params

    def conv(x, w, b):
        y = jax.lax.conv_general_dilated(
            x, w, window_strides=(1, 1), padding=((1, 1), (1, 1)),
            dimension_numbers=("NCHW", "HWIO", "NCHW"))
        return y + b.reshape(1, -1, 1, 1)

    def bn_relu(y, g, be):
        mean = y.mean(axis=(0, 2, 3), keepdims=True)
        var = ((y - mean) ** 2).mean(axis=(0, 2, 3), keepdims=True)
        yn = (y - mean) / jnp.sqrt(var + EPS)
        yn = yn * g.reshape(1, -1, 1, 1) + be.reshape(1, -1, 1, 1)
        return jnp.maximum(yn, 0.0)

    y = bn_relu(conv(x_nchw, w1, b1), g1, be1)
    y = bn_relu(conv(y, w2, b2), g2, be2)
    n, c, h, w = y.shape
    return y.reshape(n, c, h // 2, 2, w // 2, 2).max(axis=(3, 5))


if __name__ == "__main__":
    key = jax.random.PRNGKey(0)
    ks = jax.random.split(key, 9)
    N, Cin, Cout, H, W = 2, 4, 8, 16, 16

    x = jax.random.normal(ks[0], (N, Cin, H, W), jnp.float32)
    # Deterministic synthetic parameters (conv weights in HWIO layout).
    w1 = 0.2 * jax.random.normal(ks[1], (3, 3, Cin, Cout), jnp.float32)
    b1 = 0.1 * jax.random.normal(ks[2], (Cout,), jnp.float32)
    g1 = 1.0 + 0.1 * jax.random.normal(ks[3], (Cout,), jnp.float32)
    be1 = 0.1 * jax.random.normal(ks[4], (Cout,), jnp.float32)
    w2 = 0.2 * jax.random.normal(ks[5], (3, 3, Cout, Cout), jnp.float32)
    b2 = 0.1 * jax.random.normal(ks[6], (Cout,), jnp.float32)
    g2 = 1.0 + 0.1 * jax.random.normal(ks[7], (Cout,), jnp.float32)
    be2 = 0.1 * jax.random.normal(ks[8], (Cout,), jnp.float32)
    params = (w1, b1, g1, be1, w2, b2, g2, be2)

    out = jax.block_until_ready(convblock_pallas(x, params))
    ref = jax.block_until_ready(convblock_ref(x, params))

    assert out.shape == (N, Cout, H // 2, W // 2), out.shape
    # bf16 MXU operands (f32 accumulate) vs the f32 reference: tolerance is
    # bf16-rounding-limited through two convs; the f32-operand version of this
    # kernel matched at 3e-3.
    err = float(jnp.max(jnp.abs(out - ref)))
    assert err < 1e-1, f"max abs err {err}"
    # TODO(synk): BatchNorm running_mean/running_var buffer updates are not
    # modeled (they do not affect the forward output).
    print("KERNEL_OK")
</pallas_src>

<mosaic_0001>
module attributes {stable_mosaic.version = 11 : i64} {
  func.func @kernel(%arg0: i32, %arg1: memref<36x64xf32, #tpu.memory_space<vmem>>, %arg2: memref<3x64x128xbf16, #tpu.memory_space<vmem>>, %arg3: memref<1x128xf32, #tpu.memory_space<vmem>>, %arg4: memref<1x128xf32, #tpu.memory_space<vmem>>, %arg5: memref<3x128x128xbf16, #tpu.memory_space<vmem>>, %arg6: memref<1x128xf32, #tpu.memory_space<vmem>>, %arg7: memref<1x128xf32, #tpu.memory_space<vmem>>, %arg8: memref<16x128xf32, #tpu.memory_space<vmem>>, %arg9: memref<36x128xf32, #tpu.memory_space<vmem>>, %arg10: memref<34x128xf32, #tpu.memory_space<vmem>>) attributes {dimension_semantics = [#tpu.dimension_semantics<arbitrary>], iteration_bounds = array<i64: 1>, scalar_prefetch = 0 : i64, scratch_operands = 2 : i64, tpu.core_type = #tpu.core_type<tc>, window_params = [{pipeline_mode = #tpu.pipeline_mode<synchronous>, transform_indices = @transform_0, window_bounds = array<i64: 36, 64>}, {pipeline_mode = #tpu.pipeline_mode<synchronous>, transform_indices = @transform_1, window_bounds = array<i64: 3, 64, 128>}, {pipeline_mode = #tpu.pipeline_mode<synchronous>, transform_indices = @transform_2, window_bounds = array<i64: 1, 128>}, {pipeline_mode = #tpu.pipeline_mode<synchronous>, transform_indices = @transform_3, window_bounds = array<i64: 1, 128>}, {pipeline_mode = #tpu.pipeline_mode<synchronous>, transform_indices = @transform_4, window_bounds = array<i64: 3, 128, 128>}, {pipeline_mode = #tpu.pipeline_mode<synchronous>, transform_indices = @transform_5, window_bounds = array<i64: 1, 128>}, {pipeline_mode = #tpu.pipeline_mode<synchronous>, transform_indices = @transform_6, window_bounds = array<i64: 1, 128>}, {pipeline_mode = #tpu.pipeline_mode<synchronous>, transform_indices = @transform_7, window_bounds = array<i64: 16, 128>}]} {
    %0 = tpu.iota {dimensions = array<i32: 0>} : vector<34x1xi32>
    %c18_i32 = arith.constant 18 : i32
    %c0_i32 = arith.constant 0 : i32
    %1 = arith.cmpi eq, %c18_i32, %c0_i32 : i32
    %c1_i32 = arith.constant 1 : i32
    %2 = arith.select %1, %c1_i32, %c18_i32 : i32
    %3 = vector.broadcast %2 : i32 to vector<34x1xi32>
    %4 = arith.remsi %0, %3 : vector<34x1xi32>
    %c0_i32_0 = arith.constant 0 : i32
    %5 = vector.broadcast %c0_i32_0 : i32 to vector<34x1xi32>
    %6 = arith.cmpi ne, %4, %5 : vector<34x1xi32>
    %c0_i32_1 = arith.constant 0 : i32
    %7 = vector.broadcast %c0_i32_1 : i32 to vector<34x1xi32>
    %8 = arith.cmpi slt, %4, %7 : vector<34x1xi32>
    %c0_i32_2 = arith.constant 0 : i32
    %9 = arith.cmpi slt, %2, %c0_i32_2 : i32
    %10 = vector.broadcast %9 : i1 to vector<34x1xi1>
    %11 = vector.broadcast %10 : vector<34x1xi1> to vector<34x1xi1>
    %12 = arith.xori %8, %11 : vector<34x1xi1>
    %13 = arith.andi %12, %6 : vector<34x1xi1>
    %14 = vector.broadcast %2 : i32 to vector<34x1xi32>
    %15 = arith.addi %4, %14 : vector<34x1xi32>
    %16 = arith.select %13, %15, %4 : vector<34x1xi1>, vector<34x1xi32>
    %c16_i32 = arith.constant 16 : i32
    %17 = vector.broadcast %c16_i32 : i32 to vector<34x1xi32>
    %18 = arith.cmpi slt, %16, %17 : vector<34x1xi32>
    %19 = arith.extui %18 : vector<34x1xi1> to vector<34x1xi32>
    %20 = arith.sitofp %19 : vector<34x1xi32> to vector<34x1xf32>
    %c0 = arith.constant 0 : index
    %c0_3 = arith.constant 0 : index
    %21 = vector.load %arg1[%c0, %c0_3] : memref<36x64xf32, #tpu.memory_space<vmem>>, vector<34x64xf32>
    %22 = arith.truncf %21 : vector<34x64xf32> to vector<34x64xbf16>
    %c0_4 = arith.constant 0 : index
    %c0_5 = arith.constant 0 : index
    %c0_6 = arith.constant 0 : index
    %23 = vector.load %arg2[%c0_4, %c0_5, %c0_6] : memref<3x64x128xbf16, #tpu.memory_space<vmem>>, vector<1x64x128xbf16>
    %24 = vector.shape_cast %23 : vector<1x64x128xbf16> to vector<64x128xbf16>
    %cst = arith.constant dense<0.000000e+00> : vector<34x128xf32>
    %25 = tpu.matmul %22, %24, %cst {dimension_numbers = #tpu.dot_dimension_numbers<[1], [0], [0], [1], [0, 0, 1, 1], [], []>} : vector<34x64xbf16>, vector<64x128xbf16>, vector<34x128xf32> -> vector<34x128xf32>
    %c1 = arith.constant 1 : index
    %c0_7 = arith.constant 0 : index
    %26 = vector.load %arg1[%c1, %c0_7] : memref<36x64xf32, #tpu.memory_space<vmem>>, vector<34x64xf32>
    %27 = arith.truncf %26 : vector<34x64xf32> to vector<34x64xbf16>
    %c1_8 = arith.constant 1 : index
    %c0_9 = arith.constant 0 : index
    %c0_10 = arith.constant 0 : index
    %28 = vector.load %arg2[%c1_8, %c0_9, %c0_10] : memref<3x64x128xbf16, #tpu.memory_space<vmem>>, vector<1x64x128xbf16>
    %29 = vector.shape_cast %28 : vector<1x64x128xbf16> to vector<64x128xbf16>
    %cst_11 = arith.constant dense<0.000000e+00> : vector<34x128xf32>
    %30 = tpu.matmul %27, %29, %cst_11 {dimension_numbers = #tpu.dot_dimension_numbers<[1], [0], [0], [1], [0, 0, 1, 1], [], []>} : vector<34x64xbf16>, vector<64x128xbf16>, vector<34x128xf32> -> vector<34x128xf32>
    %31 = arith.addf %25, %30 : vector<34x128xf32>
    %c2 = arith.constant 2 : index
    %c0_12 = arith.constant 0 : index
    %32 = vector.load %arg1[%c2, %c0_12] : memref<36x64xf32, #tpu.memory_space<vmem>>, vector<34x64xf32>
    %33 = arith.truncf %32 : vector<34x64xf32> to vector<34x64xbf16>
    %c2_13 = arith.constant 2 : index
    %c0_14 = arith.constant 0 : index
    %c0_15 = arith.constant 0 : index
    %34 = vector.load %arg2[%c2_13, %c0_14, %c0_15] : memref<3x64x128xbf16, #tpu.memory_space<vmem>>, vector<1x64x128xbf16>
    %35 = vector.shape_cast %34 : vector<1x64x128xbf16> to vector<64x128xbf16>
    %cst_16 = arith.constant dense<0.000000e+00> : vector<34x128xf32>
    %36 = tpu.matmul %33, %35, %cst_16 {dimension_numbers = #tpu.dot_dimension_numbers<[1], [0], [0], [1], [0, 0, 1, 1], [], []>} : vector<34x64xbf16>, vector<64x128xbf16>, vector<34x128xf32> -> vector<34x128xf32>
    %37 = arith.addf %31, %36 : vector<34x128xf32>
    %38 = vector.broadcast %20 : vector<34x1xf32> to vector<34x128xf32>
    %39 = arith.mulf %37, %38 : vector<34x128xf32>
    %cst_17 = arith.constant dense<0.000000e+00> : vector<128xf32>
    %40 = vector.multi_reduction <add>, %39, %cst_17 [0] : vector<34x128xf32> to vector<128xf32>
    %41 = vector.shape_cast %40 : vector<128xf32> to vector<1x128xf32>
    %c8_i32 = arith.constant 8 : i32
    %42 = tpu.dynamic_rotate %41 by %c8_i32 dim 1 : vector<1x128xf32>, i32 -> vector<1x128xf32>
    %43 = arith.addf %41, %42 : vector<1x128xf32>
    %c16_i32_18 = arith.constant 16 : i32
    %44 = tpu.dynamic_rotate %43 by %c16_i32_18 dim 1 : vector<1x128xf32>, i32 -> vector<1x128xf32>
    %45 = arith.addf %43, %44 : vector<1x128xf32>
    %c32_i32 = arith.constant 32 : i32
    %46 = tpu.dynamic_rotate %45 by %c32_i32 dim 1 : vector<1x128xf32>, i32 -> vector<1x128xf32>
    %47 = arith.addf %45, %46 : vector<1x128xf32>
    %c64_i32 = arith.constant 64 : i32
    %48 = tpu.dynamic_rotate %47 by %c64_i32 dim 1 : vector<1x128xf32>, i32 -> vector<1x128xf32>
    %49 = arith.addf %47, %48 : vector<1x128xf32>
    %50 = arith.mulf %39, %37 : vector<34x128xf32>
    %cst_19 = arith.constant dense<0.000000e+00> : vector<128xf32>
    %51 = vector.multi_reduction <add>, %50, %cst_19 [0] : vector<34x128xf32> to vector<128xf32>
    %52 = vector.shape_cast %51 : vector<128xf32> to vector<1x128xf32>
    %c8_i32_20 = arith.constant 8 : i32
    %53 = tpu.dynamic_rotate %52 by %c8_i32_20 dim 1 : vector<1x128xf32>, i32 -> vector<1x128xf32>
    %54 = arith.addf %52, %53 : vector<1x128xf32>
    %c16_i32_21 = arith.constant 16 : i32
    %55 = tpu.dynamic_rotate %54 by %c16_i32_21 dim 1 : vector<1x128xf32>, i32 -> vector<1x128xf32>
    %56 = arith.addf %54, %55 : vector<1x128xf32>
    %c32_i32_22 = arith.constant 32 : i32
    %57 = tpu.dynamic_rotate %56 by %c32_i32_22 dim 1 : vector<1x128xf32>, i32 -> vector<1x128xf32>
    %58 = arith.addf %56, %57 : vector<1x128xf32>
    %c64_i32_23 = arith.constant 64 : i32
    %59 = tpu.dynamic_rotate %58 by %c64_i32_23 dim 1 : vector<1x128xf32>, i32 -> vector<1x128xf32>
    %60 = arith.addf %58, %59 : vector<1x128xf32>
    %cst_24 = arith.constant 0.001953125 : f32
    %61 = vector.broadcast %cst_24 : f32 to vector<1x128xf32>
    %62 = arith.mulf %49, %61 : vector<1x128xf32>
    %cst_25 = arith.constant 0.001953125 : f32
    %63 = vector.broadcast %cst_25 : f32 to vector<1x128xf32>
    %64 = arith.mulf %60, %63 : vector<1x128xf32>
    %65 = arith.mulf %62, %62 : vector<1x128xf32>
    %66 = arith.subf %64, %65 : vector<1x128xf32>
    %cst_26 = arith.constant 0.000000e+00 : f32
    %67 = vector.broadcast %cst_26 : f32 to vector<1x128xf32>
    %68 = arith.maximumf %66, %67 : vector<1x128xf32>
    %c0_27 = arith.constant 0 : index
    %c0_28 = arith.constant 0 : index
    %69 = vector.load %arg3[%c0_27, %c0_28] : memref<1x128xf32, #tpu.memory_space<vmem>>, vector<1x128xf32>
    %cst_29 = arith.constant 9.99999974E-6 : f32
    %70 = vector.broadcast %cst_29 : f32 to vector<1x128xf32>
    %71 = arith.addf %68, %70 : vector<1x128xf32>
    %72 = math.rsqrt %71 : vector<1x128xf32>
    %73 = arith.mulf %69, %72 : vector<1x128xf32>
    %c0_30 = arith.constant 0 : index
    %c0_31 = arith.constant 0 : index
    %74 = vector.load %arg4[%c0_30, %c0_31] : memref<1x128xf32, #tpu.memory_space<vmem>>, vector<1x128xf32>
    %75 = arith.mulf %62, %73 : vector<1x128xf32>
    %76 = arith.subf %74, %75 : vector<1x128xf32>
    %77 = vector.broadcast %73 : vector<1x128xf32> to vector<34x128xf32>
    %78 = arith.mulf %37, %77 : vector<34x128xf32>
    %79 = vector.broadcast %76 : vector<1x128xf32> to vector<34x128xf32>
    %80 = arith.addf %78, %79 : vector<34x128xf32>
    %cst_32 = arith.constant 0.000000e+00 : f32
    %81 = vector.broadcast %cst_32 : f32 to vector<34x128xf32>
    %82 = arith.maximumf %80, %81 : vector<34x128xf32>
    %c1_33 = arith.constant 1 : index
    %c0_34 = arith.constant 0 : index
    %83 = vector.load %arg9[%c1_33, %c0_34] : memref<36x128xf32, #tpu.memory_space<vmem>>, vector<34x128xf32>
    tpu.vector_store %arg9[%c1_33, %c0_34], %82 {strides = array<i32>} : memref<36x128xf32, #tpu.memory_space<vmem>>, vector<34x128xf32>,
    %cst_35 = arith.constant 0.000000e+00 : f32
    %84 = vector.broadcast %cst_35 : f32 to vector<1x128xf32>
    %c0_36 = arith.constant 0 : index
    %c0_37 = arith.constant 0 : index
    %85 = vector.load %arg9[%c0_36, %c0_37] : memref<36x128xf32, #tpu.memory_space<vmem>>, vector<1x128xf32>
    tpu.vector_store %arg9[%c0_36, %c0_37], %84 {strides = array<i32>} : memref<36x128xf32, #tpu.memory_space<vmem>>, vector<1x128xf32>,
    %c17 = arith.constant 17 : index
    %c0_38 = arith.constant 0 : index
    %86 = vector.load %arg9[%c17, %c0_38] : memref<36x128xf32, #tpu.memory_space<vmem>>, vector<1x128xf32>
    tpu.vector_store %arg9[%c17, %c0_38], %84 {strides = array<i32>} : memref<36x128xf32, #tpu.memory_space<vmem>>, vector<1x128xf32>,
    %c18 = arith.constant 18 : index
    %c0_39 = arith.constant 0 : index
    %87 = vector.load %arg9[%c18, %c0_39] : memref<36x128xf32, #tpu.memory_space<vmem>>, vector<1x128xf32>
    tpu.vector_store %arg9[%c18, %c0_39], %84 {strides = array<i32>} : memref<36x128xf32, #tpu.memory_space<vmem>>, vector<1x128xf32>,
    %c35 = arith.constant 35 : index
    %c0_40 = arith.constant 0 : index
    %88 = vector.load %arg9[%c35, %c0_40] : memref<36x128xf32, #tpu.memory_space<vmem>>, vector<1x128xf32>
    tpu.vector_store %arg9[%c35, %c0_40], %84 {strides = array<i32>} : memref<36x128xf32, #tpu.memory_space<vmem>>, vector<1x128xf32>,
    %c0_41 = arith.constant 0 : index
    %c0_42 = arith.constant 0 : index
    %89 = vector.load %arg9[%c0_41, %c0_42] : memref<36x128xf32, #tpu.memory_space<vmem>>, vector<34x128xf32>
    %90 = arith.truncf %89 : vector<34x128xf32> to vector<34x128xbf16>
    %c0_43 = arith.constant 0 : index
    %c0_44 = arith.constant 0 : index
    %c0_45 = arith.constant 0 : index
    %91 = vector.load %arg5[%c0_43, %c0_44, %c0_45] : memref<3x128x128xbf16, #tpu.memory_space<vmem>>, vector<1x128x128xbf16>
    %92 = vector.shape_cast %91 : vector<1x128x128xbf16> to vector<128x128xbf16>
    %cst_46 = arith.constant dense<0.000000e+00> : vector<34x128xf32>
    %93 = tpu.matmul %90, %92, %cst_46 {dimension_numbers = #tpu.dot_dimension_numbers<[1], [0], [0], [1], [0, 0, 1, 1], [], []>} : vector<34x128xbf16>, vector<128x128xbf16>, vector<34x128xf32> -> vector<34x128xf32>
    %c1_47 = arith.constant 1 : index
    %c0_48 = arith.constant 0 : index
    %94 = vector.load %arg9[%c1_47, %c0_48] : memref<36x128xf32, #tpu.memory_space<vmem>>, vector<34x128xf32>
    %95 = arith.truncf %94 : vector<34x128xf32> to vector<34x128xbf16>
    %c1_49 = arith.constant 1 : index
    %c0_50 = arith.constant 0 : index
    %c0_51 = arith.constant 0 : index
    %96 = vector.load %arg5[%c1_49, %c0_50, %c0_51] : memref<3x128x128xbf16, #tpu.memory_space<vmem>>, vector<1x128x128xbf16>
    %97 = vector.shape_cast %96 : vector<1x128x128xbf16> to vector<128x128xbf16>
    %cst_52 = arith.constant dense<0.000000e+00> : vector<34x128xf32>
    %98 = tpu.matmul %95, %97, %cst_52 {dimension_numbers = #tpu.dot_dimension_numbers<[1], [0], [0], [1], [0, 0, 1, 1], [], []>} : vector<34x128xbf16>, vector<128x128xbf16>, vector<34x128xf32> -> vector<34x128xf32>
    %99 = arith.addf %93, %98 : vector<34x128xf32>
    %c2_53 = arith.constant 2 : index
    %c0_54 = arith.constant 0 : index
    %100 = vector.load %arg9[%c2_53, %c0_54] : memref<36x128xf32, #tpu.memory_space<vmem>>, vector<34x128xf32>
    %101 = arith.truncf %100 : vector<34x128xf32> to vector<34x128xbf16>
    %c2_55 = arith.constant 2 : index
    %c0_56 = arith.constant 0 : index
    %c0_57 = arith.constant 0 : index
    %102 = vector.load %arg5[%c2_55, %c0_56, %c0_57] : memref<3x128x128xbf16, #tpu.memory_space<vmem>>, vector<1x128x128xbf16>
    %103 = vector.shape_cast %102 : vector<1x128x128xbf16> to vector<128x128xbf16>
    %cst_58 = arith.constant dense<0.000000e+00> : vector<34x128xf32>
    %104 = tpu.matmul %101, %103, %cst_58 {dimension_numbers = #tpu.dot_dimension_numbers<[1], [0], [0], [1], [0, 0, 1, 1], [], []>} : vector<34x128xbf16>, vector<128x128xbf16>, vector<34x128xf32> -> vector<34x128xf32>
    %105 = arith.addf %99, %104 : vector<34x128xf32>
    %106 = vector.broadcast %20 : vector<34x1xf32> to vector<34x128xf32>
    %107 = arith.mulf %105, %106 : vector<34x128xf32>
    %cst_59 = arith.constant dense<0.000000e+00> : vector<128xf32>
    %108 = vector.multi_reduction <add>, %107, %cst_59 [0] : vector<34x128xf32> to vector<128xf32>
    %109 = vector.shape_cast %108 : vector<128xf32> to vector<1x128xf32>
    %c8_i32_60 = arith.constant 8 : i32
    %110 = tpu.dynamic_rotate %109 by %c8_i32_60 dim 1 : vector<1x128xf32>, i32 -> vector<1x128xf32>
    %111 = arith.addf %109, %110 : vector<1x128xf32>
    %c16_i32_61 = arith.constant 16 : i32
    %112 = tpu.dynamic_rotate %111 by %c16_i32_61 dim 1 : vector<1x128xf32>, i32 -> vector<1x128xf32>
    %113 = arith.addf %111, %112 : vector<1x128xf32>
    %c32_i32_62 = arith.constant 32 : i32
    %114 = tpu.dynamic_rotate %113 by %c32_i32_62 dim 1 : vector<1x128xf32>, i32 -> vector<1x128xf32>
    %115 = arith.addf %113, %114 : vector<1x128xf32>
    %c64_i32_63 = arith.constant 64 : i32
    %116 = tpu.dynamic_rotate %115 by %c64_i32_63 dim 1 : vector<1x128xf32>, i32 -> vector<1x128xf32>
    %117 = arith.addf %115, %116 : vector<1x128xf32>
    %118 = arith.mulf %107, %105 : vector<34x128xf32>
    %cst_64 = arith.constant dense<0.000000e+00> : vector<128xf32>
    %119 = vector.multi_reduction <add>, %118, %cst_64 [0] : vector<34x128xf32> to vector<128xf32>
    %120 = vector.shape_cast %119 : vector<128xf32> to vector<1x128xf32>
    %c8_i32_65 = arith.constant 8 : i32
    %121 = tpu.dynamic_rotate %120 by %c8_i32_65 dim 1 : vector<1x128xf32>, i32 -> vector<1x128xf32>
    %122 = arith.addf %120, %121 : vector<1x128xf32>
    %c16_i32_66 = arith.constant 16 : i32
    %123 = tpu.dynamic_rotate %122 by %c16_i32_66 dim 1 : vector<1x128xf32>, i32 -> vector<1x128xf32>
    %124 = arith.addf %122, %123 : vector<1x128xf32>
    %c32_i32_67 = arith.constant 32 : i32
    %125 = tpu.dynamic_rotate %124 by %c32_i32_67 dim 1 : vector<1x128xf32>, i32 -> vector<1x128xf32>
    %126 = arith.addf %124, %125 : vector<1x128xf32>
    %c64_i32_68 = arith.constant 64 : i32
    %127 = tpu.dynamic_rotate %126 by %c64_i32_68 dim 1 : vector<1x128xf32>, i32 -> vector<1x128xf32>
    %128 = arith.addf %126, %127 : vector<1x128xf32>
    %cst_69 = arith.constant 0.001953125 : f32
    %129 = vector.broadcast %cst_69 : f32 to vector<1x128xf32>
    %130 = arith.mulf %117, %129 : vector<1x128xf32>
    %cst_70 = arith.constant 0.001953125 : f32
    %131 = vector.broadcast %cst_70 : f32 to vector<1x128xf32>
    %132 = arith.mulf %128, %131 : vector<1x128xf32>
    %133 = arith.mulf %130, %130 : vector<1x128xf32>
    %134 = arith.subf %132, %133 : vector<1x128xf32>
    %cst_71 = arith.constant 0.000000e+00 : f32
    %135 = vector.broadcast %cst_71 : f32 to vector<1x128xf32>
    %136 = arith.maximumf %134, %135 : vector<1x128xf32>
    %c0_72 = arith.constant 0 : index
    %c0_73 = arith.constant 0 : index
    %137 = vector.load %arg6[%c0_72, %c0_73] : memref<1x128xf32, #tpu.memory_space<vmem>>, vector<1x128xf32>
    %cst_74 = arith.constant 9.99999974E-6 : f32
    %138 = vector.broadcast %cst_74 : f32 to vector<1x128xf32>
    %139 = arith.addf %136, %138 : vector<1x128xf32>
    %140 = math.rsqrt %139 : vector<1x128xf32>
    %141 = arith.mulf %137, %140 : vector<1x128xf32>
    %c0_75 = arith.constant 0 : index
    %c0_76 = arith.constant 0 : index
    %142 = vector.load %arg7[%c0_75, %c0_76] : memref<1x128xf32, #tpu.memory_space<vmem>>, vector<1x128xf32>
    %143 = arith.mulf %130, %141 : vector<1x128xf32>
    %144 = arith.subf %142, %143 : vector<1x128xf32>
    %145 = vector.broadcast %141 : vector<1x128xf32> to vector<34x128xf32>
    %146 = arith.mulf %105, %145 : vector<34x128xf32>
    %147 = vector.broadcast %144 : vector<1x128xf32> to vector<34x128xf32>
    %148 = arith.addf %146, %147 : vector<34x128xf32>
    %cst_77 = arith.constant 0.000000e+00 : f32
    %149 = vector.broadcast %cst_77 : f32 to vector<34x128xf32>
    %150 = arith.maximumf %148, %149 : vector<34x128xf32>
    %c0_78 = arith.constant 0 : index
    %c0_79 = arith.constant 0 : index
    %151 = vector.load %arg10[%c0_78, %c0_79] : memref<34x128xf32, #tpu.memory_space<vmem>>, vector<34x128xf32>
    tpu.vector_store %arg10[%c0_78, %c0_79], %150 {strides = array<i32>} : memref<34x128xf32, #tpu.memory_space<vmem>>, vector<34x128xf32>,
    %c0_80 = arith.constant 0 : index
    %c0_81 = arith.constant 0 : index
    %152 = tpu.strided_load %arg10[%c0_80, %c0_81] {strides = array<i32: 2, 1>} : memref<34x128xf32, #tpu.memory_space<vmem>>, vector<8x128xf32>
    %c1_82 = arith.constant 1 : index
    %c0_83 = arith.constant 0 : index
    %153 = tpu.strided_load %arg10[%c1_82, %c0_83] {strides = array<i32: 2, 1>} : memref<34x128xf32, #tpu.memory_space<vmem>>, vector<8x128xf32>
    %154 = arith.maximumf %152, %153 : vector<8x128xf32>
    %c0_84 = arith.constant 0 : index
    %c0_85 = arith.constant 0 : index
    %155 = vector.load %arg8[%c0_84, %c0_85] : memref<16x128xf32, #tpu.memory_space<vmem>>, vector<8x128xf32>
    tpu.vector_store %arg8[%c0_84, %c0_85], %154 {strides = array<i32>} : memref<16x128xf32, #tpu.memory_space<vmem>>, vector<8x128xf32>,
    %c18_86 = arith.constant 18 : index
    %c0_87 = arith.constant 0 : index
    %156 = tpu.strided_load %arg10[%c18_86, %c0_87] {strides = array<i32: 2, 1>} : memref<34x128xf32, #tpu.memory_space<vmem>>, vector<8x128xf32>
    %c19 = arith.constant 19 : index
    %c0_88 = arith.constant 0 : index
    %157 = tpu.strided_load %arg10[%c19, %c0_88] {strides = array<i32: 2, 1>} : memref<34x128xf32, #tpu.memory_space<vmem>>, vector<8x128xf32>
    %158 = arith.maximumf %156, %157 : vector<8x128xf32>
    %c8 = arith.constant 8 : index
    %c0_89 = arith.constant 0 : index
    %159 = vector.load %arg8[%c8, %c0_89] : memref<16x128xf32, #tpu.memory_space<vmem>>, vector<8x128xf32>
    tpu.vector_store %arg8[%c8, %c0_89], %158 {strides = array<i32>} : memref<16x128xf32, #tpu.memory_space<vmem>>, vector<8x128xf32>,
    return
  }
  func.func @transform_0(%arg0: i32) -> (i32, i32) {
    %c0_i32 = arith.constant 0 : i32
    %c0_i32_0 = arith.constant 0 : i32
    %c0_i32_1 = arith.constant 0 : i32
    return %c0_i32, %c0_i32_0 : i32, i32
  }
  func.func @transform_1(%arg0: i32) -> (i32, i32, i32) {
    %c0_i32 = arith.constant 0 : i32
    %c0_i32_0 = arith.constant 0 : i32
    %c0_i32_1 = arith.constant 0 : i32
    %c0_i32_2 = arith.constant 0 : i32
    return %c0_i32, %c0_i32_0, %c0_i32_1 : i32, i32, i32
  }
  func.func @transform_2(%arg0: i32) -> (i32, i32) {
    %c0_i32 = arith.constant 0 : i32
    %c0_i32_0 = arith.constant 0 : i32
    %c0_i32_1 = arith.constant 0 : i32
    return %c0_i32, %c0_i32_0 : i32, i32
  }
  func.func @transform_3(%arg0: i32) -> (i32, i32) {
    %c0_i32 = arith.constant 0 : i32
    %c0_i32_0 = arith.constant 0 : i32
    %c0_i32_1 = arith.constant 0 : i32
    return %c0_i32, %c0_i32_0 : i32, i32
  }
  func.func @transform_4(%arg0: i32) -> (i32, i32, i32) {
    %c0_i32 = arith.constant 0 : i32
    %c0_i32_0 = arith.constant 0 : i32
    %c0_i32_1 = arith.constant 0 : i32
    %c0_i32_2 = arith.constant 0 : i32
    return %c0_i32, %c0_i32_0, %c0_i32_1 : i32, i32, i32
  }
  func.func @transform_5(%arg0: i32) -> (i32, i32) {
    %c0_i32 = arith.constant 0 : i32
    %c0_i32_0 = arith.constant 0 : i32
    %c0_i32_1 = arith.constant 0 : i32
    return %c0_i32, %c0_i32_0 : i32, i32
  }
  func.func @transform_6(%arg0: i32) -> (i32, i32) {
    %c0_i32 = arith.constant 0 : i32
    %c0_i32_0 = arith.constant 0 : i32
    %c0_i32_1 = arith.constant 0 : i32
    return %c0_i32, %c0_i32_0 : i32, i32
  }
  func.func @transform_7(%arg0: i32) -> (i32, i32) {
    %c0_i32 = arith.constant 0 : i32
    %c0_i32_0 = arith.constant 0 : i32
    %c0_i32_1 = arith.constant 0 : i32
    return %c0_i32, %c0_i32_0 : i32, i32
  }
}

</mosaic_0001>

<llo_original>
// kernel: convblock_pallas.1
$region0: #{convblock_pallas.1}
  #allocation0 [shape = 'u32[]', space=smem, size = 0x4, offset = 0x4, fixed_abs, tag = 'smem constant byte address 0x4 - core index']
  #allocation1 [shape = 'u32[144,128]{1,0:T(1,128)}', space=vmem, size = 0x12000, scoped, tag = 'internal scratch']
  #allocation2 [shape = 'f32[36,128]{1,0:T(8,128)}', space=vmem, size = 0x5000, scoped, tag = 'scratch operand']
  #allocation3 [shape = 'f32[34,128]{1,0:T(8,128)}', space=vmem, size = 0x5000, scoped, tag = 'scratch operand']
  %s0 = inlined_call_operand.vmem [shape: f32[36,64], index: 0, kind: input, shape index: {}]
  %s1 = inlined_call_operand.vmem [shape: bf16[3,64,128], index: 1, kind: input, shape index: {}]
  %s2 = inlined_call_operand.vmem [shape: f32[1,128], index: 2, kind: input, shape index: {}]
  %s3 = inlined_call_operand.vmem [shape: f32[1,128], index: 3, kind: input, shape index: {}]
  %s4 = inlined_call_operand.vmem [shape: bf16[3,128,128], index: 4, kind: input, shape index: {}]
  %s5 = inlined_call_operand.vmem [shape: f32[1,128], index: 5, kind: input, shape index: {}]
  %s6 = inlined_call_operand.vmem [shape: f32[1,128], index: 6, kind: input, shape index: {}]
  %s7 = inlined_call_operand.vmem [shape: f32[16,128], index: 7, kind: output, shape index: {}]
  %s8 = sld [smem:[#allocation0]]
  $region38: #{convblock_pallas.1} parent=0
    _
  %s10 = ssub.s32 1, %s8
  %s11 = scalar_select 0, %s10, %s8
  // Predicated region
  $region2: #{convblock_pallas.1} parent=0 // pred_check
    _
  $region3: #{convblock_pallas.1} parent=0 // pred_check_branch
    %13 = sbr.rel (0) target = $region5
  $region4: #{convblock_pallas.1} parent=0 // pred_region
    _
  $region5: #{convblock_pallas.1} parent=0 // pred_fallthru
    _
  // Predicated region
  $region6: #{convblock_pallas.1} parent=0 // pred_check
    _
  $region7: #{convblock_pallas.1} parent=0 // pred_check_branch
    %15 = sbr.rel (0) target = $region9
  $region8: #{convblock_pallas.1} parent=0 // pred_region
    _
  $region9: #{convblock_pallas.1} parent=0 // pred_fallthru
    _
  // Predicated region
  $region10: #{convblock_pallas.1} parent=0 // pred_check
    _
  $region11: #{convblock_pallas.1} parent=0 // pred_check_branch
    %17 = sbr.rel (0) target = $region13
  $region12: #{convblock_pallas.1} parent=0 // pred_region
    _
  $region13: #{convblock_pallas.1} parent=0 // pred_fallthru
    _
  // Predicated region
  $region14: #{convblock_pallas.1} parent=0 // pred_check
    _
  $region15: #{convblock_pallas.1} parent=0 // pred_check_branch
    %19 = sbr.rel (0) target = $region17
  $region16: #{convblock_pallas.1} parent=0 // pred_region
    _
  $region17: #{convblock_pallas.1} parent=0 // pred_fallthru
    _
  // Predicated region
  $region18: #{convblock_pallas.1} parent=0 // pred_check
    _
  $region19: #{convblock_pallas.1} parent=0 // pred_check_branch
    %21 = sbr.rel (0) target = $region21
  $region20: #{convblock_pallas.1} parent=0 // pred_region
    _
  $region21: #{convblock_pallas.1} parent=0 // pred_fallthru
    _
  // Predicated region
  $region22: #{convblock_pallas.1} parent=0 // pred_check
    _
  $region23: #{convblock_pallas.1} parent=0 // pred_check_branch
    %23 = sbr.rel (0) target = $region25
  $region24: #{convblock_pallas.1} parent=0 // pred_region
    _
  $region25: #{convblock_pallas.1} parent=0 // pred_fallthru
    _
  // Predicated region
  $region26: #{convblock_pallas.1} parent=0 // pred_check
    _
  $region27: #{convblock_pallas.1} parent=0 // pred_check_branch
    %25 = sbr.rel (0) target = $region29
  $region28: #{convblock_pallas.1} parent=0 // pred_region
    _
  $region29: #{convblock_pallas.1} parent=0 // pred_fallthru
    _
  %v27 = vlaneseq
  %v28 = vshrl.u32 %v27, 7
  %v29 = vadd.s32 %v28, 8
  %v30 = vadd.s32 %v28, 16
  %v31 = vadd.s32 %v28, 24
  %v32 = vadd.s32 %v28, 32
  %vm33 = vcmp.lt.s32.totalorder %v28, 0
  %v34 = vsub.s32 0, %v28
  %v35 = vsel %vm33, %v34, %v28
  %v36 = vmul.u32.u64.compose %v35, 3817748708
  %v37 = vextract.low.u32 %v36
  %v38 = vextract.high.u32 %v36
  %v39 = vshrl.u32 %v38, 4
  %v40 = vmul.u32 %v39, 18
  %v41 = vsub.s32 %v35, %v40
  %v42 = vsub.s32 0, %v41
  %v43 = vsel %vm33, %v42, %v41
  %vm44 = vcmp.lt.s32.totalorder %v29, 0
  %v45 = vsub.s32 0, %v29
  %v46 = vsel %vm44, %v45, %v29
  %v47 = vmul.u32.u64.compose %v46, 3817748708
  %v48 = vextract.low.u32 %v47
  %v49 = vextract.high.u32 %v47
  %v50 = vshrl.u32 %v49, 4
  %v51 = vmul.u32 %v50, 18
  %v52 = vsub.s32 %v46, %v51
  %v53 = vsub.s32 0, %v52
  %v54 = vsel %vm44, %v53, %v52
  %vm55 = vcmp.lt.s32.totalorder %v30, 0
  %v56 = vsub.s32 0, %v30
  %v57 = vsel %vm55, %v56, %v30
  %v58 = vmul.u32.u64.compose %v57, 3817748708
  %v59 = vextract.low.u32 %v58
  %v60 = vextract.high.u32 %v58
  %v61 = vshrl.u32 %v60, 4
  %v62 = vmul.u32 %v61, 18
  %v63 = vsub.s32 %v57, %v62
  %v64 = vsub.s32 0, %v63
  %v65 = vsel %vm55, %v64, %v63
  %vm66 = vcmp.lt.s32.totalorder %v31, 0
  %v67 = vsub.s32 0, %v31
  %v68 = vsel %vm66, %v67, %v31
  %v69 = vmul.u32.u64.compose %v68, 3817748708
  %v70 = vextract.low.u32 %v69
  %v71 = vextract.high.u32 %v69
  %v72 = vshrl.u32 %v71, 4
  %v73 = vmul.u32 %v72, 18
  %v74 = vsub.s32 %v68, %v73
  %v75 = vsub.s32 0, %v74
  %v76 = vsel %vm66, %v75, %v74
  %vm77 = vcmp.lt.s32.totalorder %v32, 0
  %v78 = vsub.s32 0, %v32
  %v79 = vsel %vm77, %v78, %v32
  %v80 = vmul.u32.u64.compose %v79, 3817748708
  %v81 = vextract.low.u32 %v80
  %v82 = vextract.high.u32 %v80
  %v83 = vshrl.u32 %v82, 4
  %v84 = vmul.u32 %v83, 18
  %v85 = vsub.s32 %v79, %v84
  %v86 = vsub.s32 0, %v85
  %v87 = vsel %vm77, %v86, %v85
  %vm88 = vcmp.ne.s32.totalorder %v43, 0
  %vm89 = vcmp.ne.s32.totalorder %v54, 0
  %vm90 = vcmp.ne.s32.totalorder %v65, 0
  %vm91 = vcmp.ne.s32.totalorder %v76, 0
  %vm92 = vcmp.ne.s32.totalorder %v87, 0
  %vm93 = vcmp.lt.s32.totalorder %v43, 0
  %vm94 = vcmp.lt.s32.totalorder %v54, 0
  %vm95 = vcmp.lt.s32.totalorder %v65, 0
  %vm96 = vcmp.lt.s32.totalorder %v76, 0
  %vm97 = vcmp.lt.s32.totalorder %v87, 0
  %vm98 = vmand %vm93, %vm88
  %vm99 = vmand %vm94, %vm89
  %vm100 = vmand %vm95, %vm90
  %vm101 = vmand %vm96, %vm91
  %vm102 = vmand %vm97, %vm92
  %v103 = vadd.s32 %v43, 18
  %v104 = vadd.s32 %v54, 18
  %v105 = vadd.s32 %v65, 18
  %v106 = vadd.s32 %v76, 18
  %v107 = vadd.s32 %v87, 18
  %v108 = vsel %vm98, %v103, %v43
  %v109 = vsel %vm99, %v104, %v54
  %v110 = vsel %vm100, %v105, %v65
  %v111 = vsel %vm101, %v106, %v76
  %v112 = vsel %vm102, %v107, %v87
  %vm113 = vcmp.lt.s32.totalorder %v108, 16
  %vm114 = vcmp.lt.s32.totalorder %v109, 16
  %vm115 = vcmp.lt.s32.totalorder %v110, 16
  %vm116 = vcmp.lt.s32.totalorder %v111, 16
  %vm117 = vcmp.lt.s32.totalorder %v112, 16
  %v118 = vsel %vm113, 1, 0
  %v119 = vsel %vm114, 1, 0
  %v120 = vsel %vm115, 1, 0
  %v121 = vsel %vm116, 1, 0
  %v122 = vsel %vm117, 1, 0
  %v123 = vcvt.s32.f32 %v118
  %v124 = vcvt.s32.f32 %v119
  %v125 = vcvt.s32.f32 %v120
  %v126 = vcvt.s32.f32 %v121
  %v127 = vcvt.s32.f32 %v122
  %v128 = vld [vmem:[%s0] sm:$0xff]
  %v129 = vld [vmem:[%s0 + $0x8] sm:$0xff]
  %v130 = vld [vmem:[%s0 + $0x10] sm:$0xff]
  %v131 = vld [vmem:[%s0 + $0x18] sm:$0xff]
  %v132 = vld [vmem:[%s0 + $0x20] sm:$0x3]
  %v133 = vpack.c.bf16 %v129, %v128
  %v134 = vpack.c.bf16 %v131, %v130
  %v135 = vpack.c.bf16 %v132, %v132
  %v136 = vld [vmem:[%s1] sm:$0xf]
  %v137 = vld [vmem:[%s1 + $0x4] sm:$0xf]
  %v138 = vld [vmem:[%s1 + $0x8] sm:$0xf]
  %v139 = vld [vmem:[%s1 + $0xc] sm:$0xf]
  %v140 = vld [vmem:[%s1 + $0x10] sm:$0xf]
  %v141 = vld [vmem:[%s1 + $0x14] sm:$0xf]
  %v142 = vld [vmem:[%s1 + $0x18] sm:$0xf]
  %v143 = vld [vmem:[%s1 + $0x1c] sm:$0xf]
  %v144 = vld [vmem:[%s0 + $0x1] sm:$0xff]
  %v145 = vld [vmem:[%s0 + $0x9] sm:$0xff]
  %v146 = vld [vmem:[%s0 + $0x11] sm:$0xff]
  %v147 = vld [vmem:[%s0 + $0x19] sm:$0xff]
  %v148 = vld [vmem:[%s0 + $0x21] sm:$0x3]
  %v149 = vpack.c.bf16 %v145, %v144
  %v150 = vpack.c.bf16 %v147, %v146
  %v151 = vpack.c.bf16 %v148, %v148
  %s152 = scalar_lea.vmem %s1, 32
  %v153 = vld [vmem:[%s152] sm:$0xf]
  %v154 = vld [vmem:[%s152 + $0x4] sm:$0xf]
  %v155 = vld [vmem:[%s152 + $0x8] sm:$0xf]
  %v156 = vld [vmem:[%s152 + $0xc] sm:$0xf]
  %v157 = vld [vmem:[%s152 + $0x10] sm:$0xf]
  %v158 = vld [vmem:[%s152 + $0x14] sm:$0xf]
  %v159 = vld [vmem:[%s152 + $0x18] sm:$0xf]
  %v160 = vld [vmem:[%s152 + $0x1c] sm:$0xf]
  %v169 = vunpack.c.l.b16 %v153
  %v170 = vunpack.c.l.b16 %v154
  %v171 = vunpack.c.l.b16 %v155
  %v172 = vunpack.c.l.b16 %v156
  %v173 = vunpack.c.l.b16 %v157
  %v174 = vunpack.c.l.b16 %v158
  %v175 = vunpack.c.l.b16 %v159
  %v176 = vunpack.c.l.b16 %v160
  %v177 = vpack.c.b16 %v170, %v169
  %v178 = vpack.c.b16 %v172, %v171
  %v179 = vpack.c.b16 %v174, %v173
  %v180 = vpack.c.b16 %v176, %v175
  %vm185 = vcmask 523264
  %v187 = vsel %vm185, %v149, 0
  %v190 = vsel %vm185, %v150, 0
  %v193 = vsel %vm185, %v151, 0
  %195 = vmatprep.subr.bf16.mxu0 0
  %196 = vmatpush1.bf16.msra.mxu0 %v177
  %197 = vmatprep.subr.bf16.mxu0 0
  %198 = vmatpush1.bf16.msra.mxu0 %v178
  %199 = vmatprep.subr.bf16.mxu0 0
  %200 = vmatpush1.bf16.msra.mxu0 %v179
  %201 = vmatprep.subr.bf16.mxu0 0
  %202 = vmatpush1.bf16.msra.mxu0 %v180
  %203 = vmatprep.subr.bf16.mxu0 0
  %204 = vmatpush1.bf16.msra.mxu0 0
  %205 = vmatprep.subr.bf16.mxu0 0
  %206 = vmatpush1.bf16.msra.mxu0 0
  %207 = vmatprep.subr.bf16.mxu0 0
  %208 = vmatpush1.bf16.msra.mxu0 0
  %209 = vmatprep.subr.bf16.mxu0 0
  %210 = vmatpush1.bf16.msra.mxu0 0
  %211 = vmatprep.subr.bf16.mxu0 0
  %212 = vmatpush1.bf16.msra.mxu0 0
  %213 = vmatprep.subr.bf16.mxu0 0
  %214 = vmatpush1.bf16.msra.mxu0 0
  %215 = vmatprep.subr.bf16.mxu0 0
  %216 = vmatpush1.bf16.msra.mxu0 0
  %217 = vmatprep.subr.bf16.mxu0 0
  %218 = vmatpush1.bf16.msra.mxu0 0
  %219 = vmatprep.subr.bf16.mxu0 0
  %220 = vmatpush1.bf16.msra.mxu0 0
  %221 = vmatprep.subr.bf16.mxu0 0
  %222 = vmatpush1.bf16.msra.mxu0 0
  %223 = vmatprep.subr.bf16.mxu0 0
  %224 = vmatpush1.bf16.msra.mxu0 0
  %225 = vmatprep.subr.bf16.mxu0 0
  %226 = vmatpush1.bf16.msra.mxu0 0
  %227 = vmatprep.mubr.bf16.mxu0 0
  %228 = vmatmul.mubr.bf16.gmra.mrb[0].mxu0 %v187
  %v229 = vpop.f32.mrb[0].mxu0
  %v230 = vadd.f32 0.0, %v229
  %v231 = vpop.f32.mrb[0].mxu0
  %v232 = vpop.f32.mrb[0].mxu0
  %v233 = vadd.f32 0.0, %v232
  %v234 = vpop.f32.mrb[0].mxu0
  %235 = vmatprep.mubr.bf16.mxu0 0
  %236 = vmatmul.mubr.bf16.gmra.mrb[0].mxu0 %v190
  %v237 = vpop.f32.mrb[0].mxu0
  %v238 = vadd.f32 0.0, %v237
  %v239 = vpop.f32.mrb[0].mxu0
  %v240 = vpop.f32.mrb[0].mxu0
  %v241 = vadd.f32 0.0, %v240
  %v242 = vpop.f32.mrb[0].mxu0
  %243 = vmatprep.mubr.bf16.mxu0 0
  %244 = vmatmul.mubr.bf16.gmra.mrb[0].mxu0 %v193
  %v245 = vpop.f32.mrb[0].mxu0
  %v246 = vadd.f32 0.0, %v245
  %v247 = vpop.f32.mrb[0].mxu0
  %v248 = vpop.f32.mrb[0].mxu0
  %v249 = vpop.f32.mrb[0].mxu0
  %250 = vdwg.mxu0
  %v259 = vunpack.c.l.b16 %v136
  %v260 = vunpack.c.l.b16 %v137
  %v261 = vunpack.c.l.b16 %v138
  %v262 = vunpack.c.l.b16 %v139
  %v263 = vunpack.c.l.b16 %v140
  %v264 = vunpack.c.l.b16 %v141
  %v265 = vunpack.c.l.b16 %v142
  %v266 = vunpack.c.l.b16 %v143
  %v267 = vpack.c.b16 %v260, %v259
  %v268 = vpack.c.b16 %v262, %v261
  %v269 = vpack.c.b16 %v264, %v263
  %v270 = vpack.c.b16 %v266, %v265
  %v276 = vsel %vm185, %v133, 0
  %v279 = vsel %vm185, %v134, 0
  %v282 = vsel %vm185, %v135, 0
  %284 = vmatprep.subr.bf16.mxu0 0
  %285 = vmatpush1.bf16.msra.mxu0 %v267
  %286 = vmatprep.subr.bf16.mxu0 0
  %287 = vmatpush1.bf16.msra.mxu0 %v268
  %288 = vmatprep.subr.bf16.mxu0 0
  %289 = vmatpush1.bf16.msra.mxu0 %v269
  %290 = vmatprep.subr.bf16.mxu0 0
  %291 = vmatpush1.bf16.msra.mxu0 %v270
  %292 = vmatprep.subr.bf16.mxu0 0
  %293 = vmatpush1.bf16.msra.mxu0 0
  %294 = vmatprep.subr.bf16.mxu0 0
  %295 = vmatpush1.bf16.msra.mxu0 0
  %296 = vmatprep.subr.bf16.mxu0 0
  %297 = vmatpush1.bf16.msra.mxu0 0
  %298 = vmatprep.subr.bf16.mxu0 0
  %299 = vmatpush1.bf16.msra.mxu0 0
  %300 = vmatprep.subr.bf16.mxu0 0
  %301 = vmatpush1.bf16.msra.mxu0 0
  %302 = vmatprep.subr.bf16.mxu0 0
  %303 = vmatpush1.bf16.msra.mxu0 0
  %304 = vmatprep.subr.bf16.mxu0 0
  %305 = vmatpush1.bf16.msra.mxu0 0
  %306 = vmatprep.subr.bf16.mxu0 0
  %307 = vmatpush1.bf16.msra.mxu0 0
  %308 = vmatprep.subr.bf16.mxu0 0
  %309 = vmatpush1.bf16.msra.mxu0 0
  %310 = vmatprep.subr.bf16.mxu0 0
  %311 = vmatpush1.bf16.msra.mxu0 0
  %312 = vmatprep.subr.bf16.mxu0 0
  %313 = vmatpush1.bf16.msra.mxu0 0
  %314 = vmatprep.subr.bf16.mxu0 0
  %315 = vmatpush1.bf16.msra.mxu0 0
  %316 = vmatprep.mubr.bf16.mxu0 0
  %317 = vmatmul.mubr.bf16.gmra.mrb[0].mxu0 %v276
  %v318 = vpop.f32.mrb[0].mxu0
  %v319 = vadd.f32 %v230, %v318
  %v320 = vpop.f32.mrb[0].mxu0
  %v321 = vpop.f32.mrb[0].mxu0
  %v322 = vadd.f32 %v233, %v321
  %v323 = vpop.f32.mrb[0].mxu0
  %324 = vmatprep.mubr.bf16.mxu0 0
  %325 = vmatmul.mubr.bf16.gmra.mrb[0].mxu0 %v279
  %v326 = vpop.f32.mrb[0].mxu0
  %v327 = vadd.f32 %v238, %v326
  %v328 = vpop.f32.mrb[0].mxu0
  %v329 = vpop.f32.mrb[0].mxu0
  %v330 = vadd.f32 %v241, %v329
  %v331 = vpop.f32.mrb[0].mxu0
  %332 = vmatprep.mubr.bf16.mxu0 0
  %333 = vmatmul.mubr.bf16.gmra.mrb[0].mxu0 %v282
  %v334 = vpop.f32.mrb[0].mxu0
  %v335 = vadd.f32 %v246, %v334
  %v336 = vpop.f32.mrb[0].mxu0
  %v337 = vpop.f32.mrb[0].mxu0
  %v338 = vpop.f32.mrb[0].mxu0
  %339 = vdwg.mxu0
  %v340 = vld [vmem:[%s0 + $0x2] sm:$0xff]
  %v341 = vld [vmem:[%s0 + $0xa] sm:$0xff]
  %v342 = vld [vmem:[%s0 + $0x12] sm:$0xff]
  %v343 = vld [vmem:[%s0 + $0x1a] sm:$0xff]
  %v344 = vld [vmem:[%s0 + $0x22] sm:$0x3]
  %v345 = vpack.c.bf16 %v341, %v340
  %v346 = vpack.c.bf16 %v343, %v342
  %v347 = vpack.c.bf16 %v344, %v344
  %s348 = scalar_lea.vmem %s1, 64
  %v349 = vld [vmem:[%s348] sm:$0xf]
  %v350 = vld [vmem:[%s348 + $0x4] sm:$0xf]
  %v351 = vld [vmem:[%s348 + $0x8] sm:$0xf]
  %v352 = vld [vmem:[%s348 + $0xc] sm:$0xf]
  %v353 = vld [vmem:[%s348 + $0x10] sm:$0xf]
  %v354 = vld [vmem:[%s348 + $0x14] sm:$0xf]
  %v355 = vld [vmem:[%s348 + $0x18] sm:$0xf]
  %v356 = vld [vmem:[%s348 + $0x1c] sm:$0xf]
  %v365 = vunpack.c.l.b16 %v349
  %v366 = vunpack.c.l.b16 %v350
  %v367 = vunpack.c.l.b16 %v351
  %v368 = vunpack.c.l.b16 %v352
  %v369 = vunpack.c.l.b16 %v353
  %v370 = vunpack.c.l.b16 %v354
  %v371 = vunpack.c.l.b16 %v355
  %v372 = vunpack.c.l.b16 %v356
  %v373 = vpack.c.b16 %v366, %v365
  %v374 = vpack.c.b16 %v368, %v367
  %v375 = vpack.c.b16 %v370, %v369
  %v376 = vpack.c.b16 %v372, %v371
  %v382 = vsel %vm185, %v345, 0
  %v385 = vsel %vm185, %v346, 0
  %v388 = vsel %vm185, %v347, 0
  %390 = vmatprep.subr.bf16.mxu0 0
  %391 = vmatpush1.bf16.msra.mxu0 %v373
  %392 = vmatprep.subr.bf16.mxu0 0
  %393 = vmatpush1.bf16.msra.mxu0 %v374
  %394 = vmatprep.subr.bf16.mxu0 0
  %395 = vmatpush1.bf16.msra.mxu0 %v375
  %396 = vmatprep.subr.bf16.mxu0 0
  %397 = vmatpush1.bf16.msra.mxu0 %v376
  %398 = vmatprep.subr.bf16.mxu0 0
  %399 = vmatpush1.bf16.msra.mxu0 0
  %400 = vmatprep.subr.bf16.mxu0 0
  %401 = vmatpush1.bf16.msra.mxu0 0
  %402 = vmatprep.subr.bf16.mxu0 0
  %403 = vmatpush1.bf16.msra.mxu0 0
  %404 = vmatprep.subr.bf16.mxu0 0
  %405 = vmatpush1.bf16.msra.mxu0 0
  %406 = vmatprep.subr.bf16.mxu0 0
  %407 = vmatpush1.bf16.msra.mxu0 0
  %408 = vmatprep.subr.bf16.mxu0 0
  %409 = vmatpush1.bf16.msra.mxu0 0
  %410 = vmatprep.subr.bf16.mxu0 0
  %411 = vmatpush1.bf16.msra.mxu0 0
  %412 = vmatprep.subr.bf16.mxu0 0
  %413 = vmatpush1.bf16.msra.mxu0 0
  %414 = vmatprep.subr.bf16.mxu0 0
  %415 = vmatpush1.bf16.msra.mxu0 0
  %416 = vmatprep.subr.bf16.mxu0 0
  %417 = vmatpush1.bf16.msra.mxu0 0
  %418 = vmatprep.subr.bf16.mxu0 0
  %419 = vmatpush1.bf16.msra.mxu0 0
  %420 = vmatprep.subr.bf16.mxu0 0
  %421 = vmatpush1.bf16.msra.mxu0 0
  %422 = vmatprep.mubr.bf16.mxu0 0
  %423 = vmatmul.mubr.bf16.gmra.mrb[0].mxu0 %v382
  %v424 = vpop.f32.mrb[0].mxu0
  %v425 = vadd.f32 0.0, %v424
  %v426 = vpop.f32.mrb[0].mxu0
  %v427 = vpop.f32.mrb[0].mxu0
  %v428 = vadd.f32 0.0, %v427
  %v429 = vpop.f32.mrb[0].mxu0
  %430 = vmatprep.mubr.bf16.mxu0 0
  %431 = vmatmul.mubr.bf16.gmra.mrb[0].mxu0 %v385
  %v432 = vpop.f32.mrb[0].mxu0
  %v433 = vadd.f32 0.0, %v432
  %v434 = vpop.f32.mrb[0].mxu0
  %v435 = vpop.f32.mrb[0].mxu0
  %v436 = vadd.f32 0.0, %v435
  %v437 = vpop.f32.mrb[0].mxu0
  %438 = vmatprep.mubr.bf16.mxu0 0
  %439 = vmatmul.mubr.bf16.gmra.mrb[0].mxu0 %v388
  %v440 = vpop.f32.mrb[0].mxu0
  %v441 = vadd.f32 0.0, %v440
  %v442 = vpop.f32.mrb[0].mxu0
  %v443 = vpop.f32.mrb[0].mxu0
  %v444 = vpop.f32.mrb[0].mxu0
  %445 = vdwg.mxu0
  %v446 = vadd.f32 %v319, %v425
  %v447 = vadd.f32 %v322, %v428
  %v448 = vadd.f32 %v327, %v433
  %v449 = vadd.f32 %v330, %v436
  %v450 = vadd.f32 %v335, %v441
  %v451 = vmul.f32 %v446, %v123
  %v452 = vmul.f32 %v447, %v124
  %v453 = vmul.f32 %v448, %v125
  %v454 = vmul.f32 %v449, %v126
  %v455 = vmul.f32 %v450, %v127
  %v456 = vadd.f32 %v451, %v452
  %v457 = vadd.f32 %v456, %v453
  %v458 = vadd.f32 %v457, %v454
  %vm459 = vcmask 1041408
  %v460 = vsel %vm459, %v455, 0.0
  %v461 = vadd.f32 %v458, %v460
  %v462 = vrot.slane %v461, 4
  %v463 = vadd.f32 %v461, %v462
  %v464 = vrot.slane %v463, 2
  %v465 = vadd.f32 %v463, %v464
  %v466 = vrot.slane %v465, 1
  %v467 = vadd.f32 %v465, %v466
  %468 = vrot.lane.b32.xlu0 %v467, 8
  %v469 = vpop.permute.xlu0 %468
  %v470 = vadd.f32 %v467, %v469
  %471 = vrot.lane.b32.xlu0 %v470, 16
  %v472 = vpop.permute.xlu0 %471
  %v473 = vadd.f32 %v470, %v472
  %474 = vrot.lane.b32.xlu0 %v473, 32
  %v475 = vpop.permute.xlu0 %474
  %v476 = vadd.f32 %v473, %v475
  %477 = vrot.lane.b32.xlu0 %v476, 64
  %v478 = vpop.permute.xlu0 %477
  %v479 = vadd.f32 %v476, %v478
  %v480 = vmul.f32 %v451, %v446
  %v481 = vmul.f32 %v452, %v447
  %v482 = vmul.f32 %v453, %v448
  %v483 = vmul.f32 %v454, %v449
  %v484 = vmul.f32 %v455, %v450
  %v485 = vadd.f32 %v480, %v481
  %v486 = vadd.f32 %v485, %v482
  %v487 = vadd.f32 %v486, %v483
  %v488 = vsel %vm459, %v484, 0.0
  %v489 = vadd.f32 %v487, %v488
  %v490 = vrot.slane %v489, 4
  %v491 = vadd.f32 %v489, %v490
  %v492 = vrot.slane %v491, 2
  %v493 = vadd.f32 %v491, %v492
  %v494 = vrot.slane %v493, 1
  %v495 = vadd.f32 %v493, %v494
  %496 = vrot.lane.b32.xlu0 %v495, 8
  %v497 = vpop.permute.xlu0 %496
  %v498 = vadd.f32 %v495, %v497
  %499 = vrot.lane.b32.xlu0 %v498, 16
  %v500 = vpop.permute.xlu0 %499
  %v501 = vadd.f32 %v498, %v500
  %502 = vrot.lane.b32.xlu0 %v501, 32
  %v503 = vpop.permute.xlu0 %502
  %v504 = vadd.f32 %v501, %v503
  %505 = vrot.lane.b32.xlu0 %v504, 64
  %v506 = vpop.permute.xlu0 %505
  %v507 = vadd.f32 %v504, %v506
  %v508 = vmul.f32 %v479, 0.001953125
  %v509 = vmul.f32 %v507, 0.001953125
  %v510 = vmul.f32 %v508, %v508
  %v511 = vsub.f32 %v509, %v510
  %v512 = vmax.f32 %v511, 0.0
  %v513 = vld [vmem:[%s2] sm:$0x1]
  %v514 = vadd.f32 %v512, 1e-05
  %v515 = vrsqrt.pop %v514
  %v516 = vmul.f32 %v513, %v515
  %v517 = vld [vmem:[%s3] sm:$0x1]
  %v518 = vmul.f32 %v508, %v516
  %v519 = vsub.f32 %v517, %v518
  %v521 = vlaneseq
  %v522 = vshrl.u32 %v521, 7
  %v523 = vsub.s32 0, %v522
  %v524 = vrot.slane %v516, %v523
  %v526 = vmul.f32 %v446, %v524
  %v527 = vmul.f32 %v447, %v524
  %v528 = vmul.f32 %v448, %v524
  %v529 = vmul.f32 %v449, %v524
  %v530 = vmul.f32 %v450, %v524
  %v532 = vlaneseq
  %v533 = vshrl.u32 %v532, 7
  %v534 = vsub.s32 0, %v533
  %v535 = vrot.slane %v519, %v534
  %v537 = vadd.f32 %v526, %v535
  %v538 = vadd.f32 %v527, %v535
  %v539 = vadd.f32 %v528, %v535
  %v540 = vadd.f32 %v529, %v535
  %v541 = vadd.f32 %v530, %v535
  %v542 = vmax.f32 %v537, 0.0
  %v543 = vmax.f32 %v538, 0.0
  %v544 = vmax.f32 %v539, 0.0
  %v545 = vmax.f32 %v540, 0.0
  %v546 = vmax.f32 %v541, 0.0
  %547 = vst [vmem:[#allocation2 + $0x1] sm:$0xff] %v542
  %548 = vst [vmem:[#allocation2 + $0x9] sm:$0xff] %v543
  %549 = vst [vmem:[#allocation2 + $0x11] sm:$0xff] %v544
  %550 = vst [vmem:[#allocation2 + $0x19] sm:$0xff] %v545
  %551 = vst [vmem:[#allocation2 + $0x21] sm:$0x3] %v546
  %552 = vst [vmem:[#allocation2] sm:$0x1] 0.0
  %553 = vst [vmem:[#allocation2 + $0x11] sm:$0x1] 0.0
  %554 = vst [vmem:[#allocation2 + $0x12] sm:$0x1] 0.0
  %555 = vst [vmem:[#allocation2 + $0x23] sm:$0x1] 0.0
  %v556 = vld [vmem:[#allocation2] sm:$0xff]
  %v557 = vld [vmem:[#allocation2 + $0x8] sm:$0xff]
  %v558 = vld [vmem:[#allocation2 + $0x10] sm:$0xff]
  %v559 = vld [vmem:[#allocation2 + $0x18] sm:$0xff]
  %v560 = vld [vmem:[#allocation2 + $0x20] sm:$0x3]
  %v561 = vpack.c.bf16 %v557, %v556
  %v562 = vpack.c.bf16 %v559, %v558
  %v563 = vpack.c.bf16 %v560, %v560
  %v564 = vld [vmem:[%s4] sm:$0xf]
  %v565 = vld [vmem:[%s4 + $0x4] sm:$0xf]
  %v566 = vld [vmem:[%s4 + $0x8] sm:$0xf]
  %v567 = vld [vmem:[%s4 + $0xc] sm:$0xf]
  %v568 = vld [vmem:[%s4 + $0x10] sm:$0xf]
  %v569 = vld [vmem:[%s4 + $0x14] sm:$0xf]
  %v570 = vld [vmem:[%s4 + $0x18] sm:$0xf]
  %v571 = vld [vmem:[%s4 + $0x1c] sm:$0xf]
  %v572 = vld [vmem:[%s4 + $0x20] sm:$0xf]
  %v573 = vld [vmem:[%s4 + $0x24] sm:$0xf]
  %v574 = vld [vmem:[%s4 + $0x28] sm:$0xf]
  %v575 = vld [vmem:[%s4 + $0x2c] sm:$0xf]
  %v576 = vld [vmem:[%s4 + $0x30] sm:$0xf]
  %v577 = vld [vmem:[%s4 + $0x34] sm:$0xf]
  %v578 = vld [vmem:[%s4 + $0x38] sm:$0xf]
  %v579 = vld [vmem:[%s4 + $0x3c] sm:$0xf]
  %v580 = vld [vmem:[#allocation2 + $0x1] sm:$0xff]
  %v581 = vld [vmem:[#allocation2 + $0x9] sm:$0xff]
  %v582 = vld [vmem:[#allocation2 + $0x11] sm:$0xff]
  %v583 = vld [vmem:[#allocation2 + $0x19] sm:$0xff]
  %v584 = vld [vmem:[#allocation2 + $0x21] sm:$0x3]
  %v585 = vpack.c.bf16 %v581, %v580
  %v586 = vpack.c.bf16 %v583, %v582
  %v587 = vpack.c.bf16 %v584, %v584
  %s588 = scalar_lea.vmem %s4, 64
  %v589 = vld [vmem:[%s588] sm:$0xf]
  %v590 = vld [vmem:[%s588 + $0x4] sm:$0xf]
  %v591 = vld [vmem:[%s588 + $0x8] sm:$0xf]
  %v592 = vld [vmem:[%s588 + $0xc] sm:$0xf]
  %v593 = vld [vmem:[%s588 + $0x10] sm:$0xf]
  %v594 = vld [vmem:[%s588 + $0x14] sm:$0xf]
  %v595 = vld [vmem:[%s588 + $0x18] sm:$0xf]
  %v596 = vld [vmem:[%s588 + $0x1c] sm:$0xf]
  %v597 = vld [vmem:[%s588 + $0x20] sm:$0xf]
  %v598 = vld [vmem:[%s588 + $0x24] sm:$0xf]
  %v599 = vld [vmem:[%s588 + $0x28] sm:$0xf]
  %v600 = vld [vmem:[%s588 + $0x2c] sm:$0xf]
  %v601 = vld [vmem:[%s588 + $0x30] sm:$0xf]
  %v602 = vld [vmem:[%s588 + $0x34] sm:$0xf]
  %v603 = vld [vmem:[%s588 + $0x38] sm:$0xf]
  %v604 = vld [vmem:[%s588 + $0x3c] sm:$0xf]
  %v621 = vunpack.c.l.b16 %v589
  %v622 = vunpack.c.l.b16 %v590
  %v623 = vunpack.c.l.b16 %v591
  %v624 = vunpack.c.l.b16 %v592
  %v625 = vunpack.c.l.b16 %v593
  %v626 = vunpack.c.l.b16 %v594
  %v627 = vunpack.c.l.b16 %v595
  %v628 = vunpack.c.l.b16 %v596
  %v629 = vunpack.c.l.b16 %v597
  %v630 = vunpack.c.l.b16 %v598
  %v631 = vunpack.c.l.b16 %v599
  %v632 = vunpack.c.l.b16 %v600
  %v633 = vunpack.c.l.b16 %v601
  %v634 = vunpack.c.l.b16 %v602
  %v635 = vunpack.c.l.b16 %v603
  %v636 = vunpack.c.l.b16 %v604
  %v637 = vpack.c.b16 %v622, %v621
  %v638 = vpack.c.b16 %v624, %v623
  %v639 = vpack.c.b16 %v626, %v625
  %v640 = vpack.c.b16 %v628, %v627
  %v641 = vpack.c.b16 %v630, %v629
  %v642 = vpack.c.b16 %v632, %v631
  %v643 = vpack.c.b16 %v634, %v633
  %v644 = vpack.c.b16 %v636, %v635
  %653 = vmatprep.subr.bf16.mxu0 0
  %654 = vmatpush1.bf16.msra.mxu0 %v637
  %655 = vmatprep.subr.bf16.mxu0 0
  %656 = vmatpush1.bf16.msra.mxu0 %v638
  %657 = vmatprep.subr.bf16.mxu0 0
  %658 = vmatpush1.bf16.msra.mxu0 %v639
  %659 = vmatprep.subr.bf16.mxu0 0
  %660 = vmatpush1.bf16.msra.mxu0 %v640
  %661 = vmatprep.subr.bf16.mxu0 0
  %662 = vmatpush1.bf16.msra.mxu0 %v641
  %663 = vmatprep.subr.bf16.mxu0 0
  %664 = vmatpush1.bf16.msra.mxu0 %v642
  %665 = vmatprep.subr.bf16.mxu0 0
  %666 = vmatpush1.bf16.msra.mxu0 %v643
  %667 = vmatprep.subr.bf16.mxu0 0
  %668 = vmatpush1.bf16.msra.mxu0 %v644
  %669 = vmatprep.subr.bf16.mxu0 0
  %670 = vmatpush1.bf16.msra.mxu0 0
  %671 = vmatprep.subr.bf16.mxu0 0
  %672 = vmatpush1.bf16.msra.mxu0 0
  %673 = vmatprep.subr.bf16.mxu0 0
  %674 = vmatpush1.bf16.msra.mxu0 0
  %675 = vmatprep.subr.bf16.mxu0 0
  %676 = vmatpush1.bf16.msra.mxu0 0
  %677 = vmatprep.subr.bf16.mxu0 0
  %678 = vmatpush1.bf16.msra.mxu0 0
  %679 = vmatprep.subr.bf16.mxu0 0
  %680 = vmatpush1.bf16.msra.mxu0 0
  %681 = vmatprep.subr.bf16.mxu0 0
  %682 = vmatpush1.bf16.msra.mxu0 0
  %683 = vmatprep.subr.bf16.mxu0 0
  %684 = vmatpush1.bf16.msra.mxu0 0
  %685 = vmatprep.mubr.bf16.mxu0 0
  %686 = vmatmul.mubr.bf16.gmra.mrb[0].mxu0 %v585
  %v687 = vpop.f32.mrb[0].mxu0
  %v688 = vadd.f32 0.0, %v687
  %v689 = vpop.f32.mrb[0].mxu0
  %v690 = vpop.f32.mrb[0].mxu0
  %v691 = vadd.f32 0.0, %v690
  %v692 = vpop.f32.mrb[0].mxu0
  %693 = vmatprep.mubr.bf16.mxu0 0
  %694 = vmatmul.mubr.bf16.gmra.mrb[0].mxu0 %v586
  %v695 = vpop.f32.mrb[0].mxu0
  %v696 = vadd.f32 0.0, %v695
  %v697 = vpop.f32.mrb[0].mxu0
  %v698 = vpop.f32.mrb[0].mxu0
  %v699 = vadd.f32 0.0, %v698
  %v700 = vpop.f32.mrb[0].mxu0
  %701 = vmatprep.mubr.bf16.mxu0 0
  %702 = vmatmul.mubr.bf16.gmra.mrb[0].mxu0 %v587
  %v703 = vpop.f32.mrb[0].mxu0
  %v704 = vadd.f32 0.0, %v703
  %v705 = vpop.f32.mrb[0].mxu0
  %v706 = vpop.f32.mrb[0].mxu0
  %v707 = vpop.f32.mrb[0].mxu0
  %708 = vdwg.mxu0
  %v725 = vunpack.c.l.b16 %v564
  %v726 = vunpack.c.l.b16 %v565
  %v727 = vunpack.c.l.b16 %v566
  %v728 = vunpack.c.l.b16 %v567
  %v729 = vunpack.c.l.b16 %v568
  %v730 = vunpack.c.l.b16 %v569
  %v731 = vunpack.c.l.b16 %v570
  %v732 = vunpack.c.l.b16 %v571
  %v733 = vunpack.c.l.b16 %v572
  %v734 = vunpack.c.l.b16 %v573
  %v735 = vunpack.c.l.b16 %v574
  %v736 = vunpack.c.l.b16 %v575
  %v737 = vunpack.c.l.b16 %v576
  %v738 = vunpack.c.l.b16 %v577
  %v739 = vunpack.c.l.b16 %v578
  %v740 = vunpack.c.l.b16 %v579
  %v741 = vpack.c.b16 %v726, %v725
  %v742 = vpack.c.b16 %v728, %v727
  %v743 = vpack.c.b16 %v730, %v729
  %v744 = vpack.c.b16 %v732, %v731
  %v745 = vpack.c.b16 %v734, %v733
  %v746 = vpack.c.b16 %v736, %v735
  %v747 = vpack.c.b16 %v738, %v737
  %v748 = vpack.c.b16 %v740, %v739
  %757 = vmatprep.subr.bf16.mxu0 0
  %758 = vmatpush1.bf16.msra.mxu0 %v741
  %759 = vmatprep.subr.bf16.mxu0 0
  %760 = vmatpush1.bf16.msra.mxu0 %v742
  %761 = vmatprep.subr.bf16.mxu0 0
  %762 = vmatpush1.bf16.msra.mxu0 %v743
  %763 = vmatprep.subr.bf16.mxu0 0
  %764 = vmatpush1.bf16.msra.mxu0 %v744
  %765 = vmatprep.subr.bf16.mxu0 0
  %766 = vmatpush1.bf16.msra.mxu0 %v745
  %767 = vmatprep.subr.bf16.mxu0 0
  %768 = vmatpush1.bf16.msra.mxu0 %v746
  %769 = vmatprep.subr.bf16.mxu0 0
  %770 = vmatpush1.bf16.msra.mxu0 %v747
  %771 = vmatprep.subr.bf16.mxu0 0
  %772 = vmatpush1.bf16.msra.mxu0 %v748
  %773 = vmatprep.subr.bf16.mxu0 0
  %774 = vmatpush1.bf16.msra.mxu0 0
  %775 = vmatprep.subr.bf16.mxu0 0
  %776 = vmatpush1.bf16.msra.mxu0 0
  %777 = vmatprep.subr.bf16.mxu0 0
  %778 = vmatpush1.bf16.msra.mxu0 0
  %779 = vmatprep.subr.bf16.mxu0 0
  %780 = vmatpush1.bf16.msra.mxu0 0
  %781 = vmatprep.subr.bf16.mxu0 0
  %782 = vmatpush1.bf16.msra.mxu0 0
  %783 = vmatprep.subr.bf16.mxu0 0
  %784 = vmatpush1.bf16.msra.mxu0 0
  %785 = vmatprep.subr.bf16.mxu0 0
  %786 = vmatpush1.bf16.msra.mxu0 0
  %787 = vmatprep.subr.bf16.mxu0 0
  %788 = vmatpush1.bf16.msra.mxu0 0
  %789 = vmatprep.mubr.bf16.mxu0 0
  %790 = vmatmul.mubr.bf16.gmra.mrb[0].mxu0 %v561
  %v791 = vpop.f32.mrb[0].mxu0
  %v792 = vadd.f32 %v688, %v791
  %v793 = vpop.f32.mrb[0].mxu0
  %v794 = vpop.f32.mrb[0].mxu0
  %v795 = vadd.f32 %v691, %v794
  %v796 = vpop.f32.mrb[0].mxu0
  %797 = vmatprep.mubr.bf16.mxu0 0
  %798 = vmatmul.mubr.bf16.gmra.mrb[0].mxu0 %v562
  %v799 = vpop.f32.mrb[0].mxu0
  %v800 = vadd.f32 %v696, %v799
  %v801 = vpop.f32.mrb[0].mxu0
  %v802 = vpop.f32.mrb[0].mxu0
  %v803 = vadd.f32 %v699, %v802
  %v804 = vpop.f32.mrb[0].mxu0
  %805 = vmatprep.mubr.bf16.mxu0 0
  %806 = vmatmul.mubr.bf16.gmra.mrb[0].mxu0 %v563
  %v807 = vpop.f32.mrb[0].mxu0
  %v808 = vadd.f32 %v704, %v807
  %v809 = vpop.f32.mrb[0].mxu0
  %v810 = vpop.f32.mrb[0].mxu0
  %v811 = vpop.f32.mrb[0].mxu0
  %812 = vdwg.mxu0
  %v813 = vld [vmem:[#allocation2 + $0x2] sm:$0xff]
  %v814 = vld [vmem:[#allocation2 + $0xa] sm:$0xff]
  %v815 = vld [vmem:[#allocation2 + $0x12] sm:$0xff]
  %v816 = vld [vmem:[#allocation2 + $0x1a] sm:$0xff]
  %v817 = vld [vmem:[#allocation2 + $0x22] sm:$0x3]
  %v818 = vpack.c.bf16 %v814, %v813
  %v819 = vpack.c.bf16 %v816, %v815
  %v820 = vpack.c.bf16 %v817, %v817
  %s821 = scalar_lea.vmem %s4, 128
  %v822 = vld [vmem:[%s821] sm:$0xf]
  %v823 = vld [vmem:[%s821 + $0x4] sm:$0xf]
  %v824 = vld [vmem:[%s821 + $0x8] sm:$0xf]
  %v825 = vld [vmem:[%s821 + $0xc] sm:$0xf]
  %v826 = vld [vmem:[%s821 + $0x10] sm:$0xf]
  %v827 = vld [vmem:[%s821 + $0x14] sm:$0xf]
  %v828 = vld [vmem:[%s821 + $0x18] sm:$0xf]
  %v829 = vld [vmem:[%s821 + $0x1c] sm:$0xf]
  %v830 = vld [vmem:[%s821 + $0x20] sm:$0xf]
  %v831 = vld [vmem:[%s821 + $0x24] sm:$0xf]
  %v832 = vld [vmem:[%s821 + $0x28] sm:$0xf]
  %v833 = vld [vmem:[%s821 + $0x2c] sm:$0xf]
  %v834 = vld [vmem:[%s821 + $0x30] sm:$0xf]
  %v835 = vld [vmem:[%s821 + $0x34] sm:$0xf]
  %v836 = vld [vmem:[%s821 + $0x38] sm:$0xf]
  %v837 = vld [vmem:[%s821 + $0x3c] sm:$0xf]
  %v854 = vunpack.c.l.b16 %v822
  %v855 = vunpack.c.l.b16 %v823
  %v856 = vunpack.c.l.b16 %v824
  %v857 = vunpack.c.l.b16 %v825
  %v858 = vunpack.c.l.b16 %v826
  %v859 = vunpack.c.l.b16 %v827
  %v860 = vunpack.c.l.b16 %v828
  %v861 = vunpack.c.l.b16 %v829
  %v862 = vunpack.c.l.b16 %v830
  %v863 = vunpack.c.l.b16 %v831
  %v864 = vunpack.c.l.b16 %v832
  %v865 = vunpack.c.l.b16 %v833
  %v866 = vunpack.c.l.b16 %v834
  %v867 = vunpack.c.l.b16 %v835
  %v868 = vunpack.c.l.b16 %v836
  %v869 = vunpack.c.l.b16 %v837
  %v870 = vpack.c.b16 %v855, %v854
  %v871 = vpack.c.b16 %v857, %v856
  %v872 = vpack.c.b16 %v859, %v858
  %v873 = vpack.c.b16 %v861, %v860
  %v874 = vpack.c.b16 %v863, %v862
  %v875 = vpack.c.b16 %v865, %v864
  %v876 = vpack.c.b16 %v867, %v866
  %v877 = vpack.c.b16 %v869, %v868
  %886 = vmatprep.subr.bf16.mxu0 0
  %887 = vmatpush1.bf16.msra.mxu0 %v870
  %888 = vmatprep.subr.bf16.mxu0 0
  %889 = vmatpush1.bf16.msra.mxu0 %v871
  %890 = vmatprep.subr.bf16.mxu0 0
  %891 = vmatpush1.bf16.msra.mxu0 %v872
  %892 = vmatprep.subr.bf16.mxu0 0
  %893 = vmatpush1.bf16.msra.mxu0 %v873
  %894 = vmatprep.subr.bf16.mxu0 0
  %895 = vmatpush1.bf16.msra.mxu0 %v874
  %896 = vmatprep.subr.bf16.mxu0 0
  %897 = vmatpush1.bf16.msra.mxu0 %v875
  %898 = vmatprep.subr.bf16.mxu0 0
  %899 = vmatpush1.bf16.msra.mxu0 %v876
  %900 = vmatprep.subr.bf16.mxu0 0
  %901 = vmatpush1.bf16.msra.mxu0 %v877
  %902 = vmatprep.subr.bf16.mxu0 0
  %903 = vmatpush1.bf16.msra.mxu0 0
  %904 = vmatprep.subr.bf16.mxu0 0
  %905 = vmatpush1.bf16.msra.mxu0 0
  %906 = vmatprep.subr.bf16.mxu0 0
  %907 = vmatpush1.bf16.msra.mxu0 0
  %908 = vmatprep.subr.bf16.mxu0 0
  %909 = vmatpush1.bf16.msra.mxu0 0
  %910 = vmatprep.subr.bf16.mxu0 0
  %911 = vmatpush1.bf16.msra.mxu0 0
  %912 = vmatprep.subr.bf16.mxu0 0
  %913 = vmatpush1.bf16.msra.mxu0 0
  %914 = vmatprep.subr.bf16.mxu0 0
  %915 = vmatpush1.bf16.msra.mxu0 0
  %916 = vmatprep.subr.bf16.mxu0 0
  %917 = vmatpush1.bf16.msra.mxu0 0
  %918 = vmatprep.mubr.bf16.mxu0 0
  %919 = vmatmul.mubr.bf16.gmra.mrb[0].mxu0 %v818
  %v920 = vpop.f32.mrb[0].mxu0
  %v921 = vadd.f32 0.0, %v920
  %v922 = vpop.f32.mrb[0].mxu0
  %v923 = vpop.f32.mrb[0].mxu0
  %v924 = vadd.f32 0.0, %v923
  %v925 = vpop.f32.mrb[0].mxu0
  %926 = vmatprep.mubr.bf16.mxu0 0
  %927 = vmatmul.mubr.bf16.gmra.mrb[0].mxu0 %v819
  %v928 = vpop.f32.mrb[0].mxu0
  %v929 = vadd.f32 0.0, %v928
  %v930 = vpop.f32.mrb[0].mxu0
  %v931 = vpop.f32.mrb[0].mxu0
  %v932 = vadd.f32 0.0, %v931
  %v933 = vpop.f32.mrb[0].mxu0
  %934 = vmatprep.mubr.bf16.mxu0 0
  %935 = vmatmul.mubr.bf16.gmra.mrb[0].mxu0 %v820
  %v936 = vpop.f32.mrb[0].mxu0
  %v937 = vadd.f32 0.0, %v936
  %v938 = vpop.f32.mrb[0].mxu0
  %v939 = vpop.f32.mrb[0].mxu0
  %v940 = vpop.f32.mrb[0].mxu0
  %941 = vdwg.mxu0
  %v942 = vadd.f32 %v792, %v921
  %v943 = vadd.f32 %v795, %v924
  %v944 = vadd.f32 %v800, %v929
  %v945 = vadd.f32 %v803, %v932
  %v946 = vadd.f32 %v808, %v937
  %v947 = vmul.f32 %v942, %v123
  %v948 = vmul.f32 %v943, %v124
  %v949 = vmul.f32 %v944, %v125
  %v950 = vmul.f32 %v945, %v126
  %v951 = vmul.f32 %v946, %v127
  %v952 = vadd.f32 %v947, %v948
  %v953 = vadd.f32 %v952, %v949
  %v954 = vadd.f32 %v953, %v950
  %v955 = vsel %vm459, %v951, 0.0
  %v956 = vadd.f32 %v954, %v955
  %v957 = vrot.slane %v956, 4
  %v958 = vadd.f32 %v956, %v957
  %v959 = vrot.slane %v958, 2
  %v960 = vadd.f32 %v958, %v959
  %v961 = vrot.slane %v960, 1
  %v962 = vadd.f32 %v960, %v961
  %963 = vrot.lane.b32.xlu0 %v962, 8
  %v964 = vpop.permute.xlu0 %963
  %v965 = vadd.f32 %v962, %v964
  %966 = vrot.lane.b32.xlu0 %v965, 16
  %v967 = vpop.permute.xlu0 %966
  %v968 = vadd.f32 %v965, %v967
  %969 = vrot.lane.b32.xlu0 %v968, 32
  %v970 = vpop.permute.xlu0 %969
  %v971 = vadd.f32 %v968, %v970
  %972 = vrot.lane.b32.xlu0 %v971, 64
  %v973 = vpop.permute.xlu0 %972
  %v974 = vadd.f32 %v971, %v973
  %v975 = vmul.f32 %v947, %v942
  %v976 = vmul.f32 %v948, %v943
  %v977 = vmul.f32 %v949, %v944
  %v978 = vmul.f32 %v950, %v945
  %v979 = vmul.f32 %v951, %v946
  %v980 = vadd.f32 %v975, %v976
  %v981 = vadd.f32 %v980, %v977
  %v982 = vadd.f32 %v981, %v978
  %v983 = vsel %vm459, %v979, 0.0
  %v984 = vadd.f32 %v982, %v983
  %v985 = vrot.slane %v984, 4
  %v986 = vadd.f32 %v984, %v985
  %v987 = vrot.slane %v986, 2
  %v988 = vadd.f32 %v986, %v987
  %v989 = vrot.slane %v988, 1
  %v990 = vadd.f32 %v988, %v989
  %991 = vrot.lane.b32.xlu0 %v990, 8
  %v992 = vpop.permute.xlu0 %991
  %v993 = vadd.f32 %v990, %v992
  %994 = vrot.lane.b32.xlu0 %v993, 16
  %v995 = vpop.permute.xlu0 %994
  %v996 = vadd.f32 %v993, %v995
  %997 = vrot.lane.b32.xlu0 %v996, 32
  %v998 = vpop.permute.xlu0 %997
  %v999 = vadd.f32 %v996, %v998
  %1000 = vrot.lane.b32.xlu0 %v999, 64
  %v1001 = vpop.permute.xlu0 %1000
  %v1002 = vadd.f32 %v999, %v1001
  %v1003 = vmul.f32 %v974, 0.001953125
  %v1004 = vmul.f32 %v1002, 0.001953125
  %v1005 = vmul.f32 %v1003, %v1003
  %v1006 = vsub.f32 %v1004, %v1005
  %v1007 = vmax.f32 %v1006, 0.0
  %v1008 = vld [vmem:[%s5] sm:$0x1]
  %v1009 = vadd.f32 %v1007, 1e-05
  %v1010 = vrsqrt.pop %v1009
  %v1011 = vmul.f32 %v1008, %v1010
  %v1012 = vld [vmem:[%s6] sm:$0x1]
  %v1013 = vmul.f32 %v1003, %v1011
  %v1014 = vsub.f32 %v1012, %v1013
  %v1016 = vlaneseq
  %v1017 = vshrl.u32 %v1016, 7
  %v1018 = vsub.s32 0, %v1017
  %v1019 = vrot.slane %v1011, %v1018
  %v1021 = vmul.f32 %v942, %v1019
  %v1022 = vmul.f32 %v943, %v1019
  %v1023 = vmul.f32 %v944, %v1019
  %v1024 = vmul.f32 %v945, %v1019
  %v1025 = vmul.f32 %v946, %v1019
  %v1027 = vlaneseq
  %v1028 = vshrl.u32 %v1027, 7
  %v1029 = vsub.s32 0, %v1028
  %v1030 = vrot.slane %v1014, %v1029
  %v1032 = vadd.f32 %v1021, %v1030
  %v1033 = vadd.f32 %v1022, %v1030
  %v1034 = vadd.f32 %v1023, %v1030
  %v1035 = vadd.f32 %v1024, %v1030
  %v1036 = vadd.f32 %v1025, %v1030
  %v1037 = vmax.f32 %v1032, 0.0
  %v1038 = vmax.f32 %v1033, 0.0
  %v1039 = vmax.f32 %v1034, 0.0
  %v1040 = vmax.f32 %v1035, 0.0
  %v1041 = vmax.f32 %v1036, 0.0
  %1042 = vst [vmem:[#allocation3] sm:$0xff] %v1037
  %1043 = vst [vmem:[#allocation3 + $0x8] sm:$0xff] %v1038
  %1044 = vst [vmem:[#allocation3 + $0x10] sm:$0xff] %v1039
  %1045 = vst [vmem:[#allocation3 + $0x18] sm:$0xff] %v1040
  %1046 = vst [vmem:[#allocation3 + $0x20] sm:$0x3] %v1041
  %v1047 = vld [vmem:[#allocation3] ss:$2 sm:$0xff]
  %s1048 = scalar_lea.vmem [#allocation3], 1
  %v1049 = vld [vmem:[%s1048] ss:$2 sm:$0xff]
  %v1050 = vmax.f32 %v1047, %v1049
  %1051 = vst [vmem:[%s7] sm:$0xff] %v1050
  %s1052 = scalar_lea.vmem [#allocation3], 18
  %v1053 = vld [vmem:[%s1052] ss:$2 sm:$0xff]
  %s1054 = scalar_lea.vmem [#allocation3], 19
  %v1055 = vld [vmem:[%s1054] ss:$2 sm:$0xff]
  %v1056 = vmax.f32 %v1053, %v1055
  %1057 = vst [vmem:[%s7 + $0x8] sm:$0xff] %v1056
  // Predicated region
  $region30: #{convblock_pallas.1} parent=0 // pred_check
    _
  $region31: #{convblock_pallas.1} parent=0 // pred_check_branch
    %1059 = sbr.rel (0) target = $region33
  $region32: #{convblock_pallas.1} parent=0 // pred_region
    _
  $region33: #{convblock_pallas.1} parent=0 // pred_fallthru
    _
  // Predicated region
  $region34: #{convblock_pallas.1} parent=0 // pred_check
    _
  $region35: #{convblock_pallas.1} parent=0 // pred_check_branch
    %1061 = sbr.rel (0) target = $region37
  $region36: #{convblock_pallas.1} parent=0 // pred_region
    _
  $region37: #{convblock_pallas.1} parent=0 // pred_fallthru
    _

</llo_original>
